<compile_context>
chip_gen: v7x
topology: tpu7x:2x2x1
jax: 0.10.0
libtpu: 0.0.40
codegen_flags: <defaults>
</compile_context>

<pallas_src>
import math
import functools

import jax
import jax.numpy as jnp
from jax.experimental import pallas as pl
from jax.experimental.pallas import tpu as pltpu


# --------------------------------------------------------------------------
# Kernel body: one row tile of the fused modulation.
# --------------------------------------------------------------------------
def _genmod_kernel(x_ref, style_ref, w_ref, b_ref, o_ref, *, C, C_pad):
    """Shapes per grid point:
      x_ref:     (TM, C)        features (C may be < 128; full-extent block)
      style_ref: (TM, S)        style codes
      w_ref:     (S,  2*C_pad)  [W_s.T | W_b.T] * w_scale  (resident, shared)
      b_ref:     (1,  2*C_pad)  [b_s   | b_b  ] * lr_mul   (resident, shared)
      o_ref:     (TM, C)        output
    """
    # Single fused EqualLinear matmul for both the scale- and bias-branch.
    # MXU is badly underfilled (S is tiny) but this kernel is HBM-bound,
    # so the matmul cost is hidden under the x/out stream.
    res = (jnp.dot(style_ref[...], w_ref[...],
                   preferred_element_type=jnp.float32)
           + b_ref[...])
    # C_pad is a multiple of 128, so both slices start on a lane-tile boundary.
    scale = res[:, :C]
    bias = res[:, C_pad:C_pad + C]
    o_ref[...] = (x_ref[...].astype(jnp.float32) * scale + bias).astype(o_ref.dtype)


# --------------------------------------------------------------------------
# One-time parameter fusion (hoisted out of the per-call path).
# --------------------------------------------------------------------------
def prepare_genmod_params(params, *, lr_mul=1.0):
    """Fold EqualLinear scaling into one fused (S, 2*C_pad) weight and
    (1, 2*C_pad) bias.  Call once at parameter-load time."""
    C, S = params["scale_w"].shape          # torch layout: (out_dim, in_dim)
    LANE = 128
    C_pad = pl.cdiv(C, LANE) * LANE
    w_scale = (1.0 / math.sqrt(S)) * lr_mul

    w_s = params["scale_w"].astype(jnp.float32).T * w_scale    # (S, C)
    w_b = params["bias_w"].astype(jnp.float32).T * w_scale     # (S, C)
    b_s = params["scale_b"].astype(jnp.float32) * lr_mul       # (C,)
    b_b = params["bias_b"].astype(jnp.float32) * lr_mul        # (C,)

    pad = C_pad - C
    if pad:
        # Pad each branch to a lane multiple so the in-kernel scale/bias split
        # lands on 128-aligned positions (pad columns give scale=0, bias=0 and
        # are never read back since x/out stay unpadded).
        w_s = jnp.pad(w_s, ((0, 0), (0, pad)))
        w_b = jnp.pad(w_b, ((0, 0), (0, pad)))
        b_s = jnp.pad(b_s, ((0, pad),))
        b_b = jnp.pad(b_b, ((0, pad),))

    w_cat = jnp.concatenate([w_s, w_b], axis=1)                 # (S, 2*C_pad)
    b_cat = jnp.concatenate([b_s, b_b], axis=0)[None, :]        # (1, 2*C_pad)
    return {"w_cat": w_cat, "b_cat": b_cat}


def _sublane(dtype):
    return {4: 8, 2: 16, 1: 32}[jnp.dtype(dtype).itemsize]


# --------------------------------------------------------------------------
# Forward wrapper.
# --------------------------------------------------------------------------
def generator_modulation(x, style, fused):
    """x: (B, N, outch), style: (B, N, styledim) -> (B, N, outch)."""
    B, N, C = x.shape
    _, _, S = style.shape
    M = B * N

    w_cat = fused["w_cat"]
    b_cat = fused["b_cat"]
    C_pad = w_cat.shape[1] // 2

    x2 = x.reshape(M, C)
    s2 = style.reshape(M, S)

    xb = jnp.dtype(x.dtype).itemsize
    sb = jnp.dtype(style.dtype).itemsize
    sub = max(_sublane(x.dtype), _sublane(style.dtype))   # dtype-aware sublane

    # ---- Row tile sizing: ~2 MiB x tile, sublane-rounded, VMEM-budgeted ----
    target_bytes = 2 << 20
    tm = target_bytes // max(1, xb * C)
    tm = max(sub, min(tm, 2048))
    tm = (tm // sub) * sub
    # Don't make the tile (much) larger than the whole problem.
    tm = min(tm, ((M + sub - 1) // sub) * sub)
    # Keep >= 2 grid steps when possible (v7x megacore sharding + pipelining).
    if tm >= M and M > sub:
        tm = max(sub, ((pl.cdiv(M, 2) + sub - 1) // sub) * sub)

    # VMEM estimate per step: double-buffered x/out/style, the resident fused
    # weight (BlockSpec still allocates 2 buffers even for a constant
    # index_map -> folded into the budget), and the f32 dot intermediate.
    def vmem_estimate(tm_):
        return int(2 * tm_ * C * xb            # x (2 bufs)
                   + 2 * tm_ * C * xb          # out (2 bufs)
                   + 2 * tm_ * S * sb          # style (2 bufs)
                   + 2 * w_cat.size * 4        # fused weight (2 bufs)
                   + 2 * b_cat.size * 4        # fused bias (2 bufs)
                   + 3 * tm_ * 2 * C_pad * 4)  # f32 dot result + temps

    VMEM_BUDGET = 24 << 20                     # safe on v5e/v6e/v7x
    while tm > sub and vmem_estimate(tm) > VMEM_BUDGET:
        tm = max(sub, ((tm // 2) // sub) * sub)

    n_tiles = pl.cdiv(M, tm)                   # ragged tail handled by Pallas

    cost = pl.CostEstimate(
        flops=2 * M * S * 2 * C_pad + 2 * M * C,
        transcendentals=0,
        bytes_accessed=int(2 * M * C * xb + M * S * sb
                           + w_cat.size * 4 + b_cat.size * 4),
    )

    kernel = functools.partial(_genmod_kernel, C=C, C_pad=C_pad)

    out = pl.pallas_call(
        kernel,
        out_shape=jax.ShapeDtypeStruct((M, C), x.dtype),
        grid_spec=pl.GridSpec(
            grid=(n_tiles,),
            in_specs=[
                pl.BlockSpec((tm, C), lambda i: (i, 0)),            # x rows
                pl.BlockSpec((tm, S), lambda i: (i, 0)),            # style rows
                pl.BlockSpec((S, 2 * C_pad), lambda i: (0, 0)),     # fused W (resident)
                pl.BlockSpec((1, 2 * C_pad), lambda i: (0, 0)),     # fused b (resident)
            ],
            out_specs=pl.BlockSpec((tm, C), lambda i: (i, 0)),
        ),
        compiler_params=pltpu.CompilerParams(
            dimension_semantics=("parallel",),
            vmem_limit_bytes=int(min(max(2 * vmem_estimate(tm), 32 << 20),
                                     48 << 20)),
        ),
        cost_estimate=cost,
    )(x2, s2, w_cat, b_cat)

    return out.reshape(B, N, C)


# --------------------------------------------------------------------------
# Synthetic parameters + pure-JAX reference (mirrors the PyTorch module).
# --------------------------------------------------------------------------
def init_params(key, styledim, outch, *, lr_mul=1.0, bias_init=0.0):
    """Deterministic synthetic parameters mirroring EqualLinear.__init__."""
    k1, k2 = jax.random.split(key)
    return {
        # nn.Parameter(torch.randn(out_dim, in_dim).div_(lr_mul))
        "scale_w": jax.random.normal(k1, (outch, styledim), jnp.float32) / lr_mul,
        "scale_b": jnp.full((outch,), bias_init, jnp.float32),
        "bias_w": jax.random.normal(k2, (outch, styledim), jnp.float32) / lr_mul,
        "bias_b": jnp.full((outch,), bias_init, jnp.float32),
    }


def _reference(x, style, params, *, lr_mul=1.0):
    S = style.shape[-1]
    w_scale = (1.0 / math.sqrt(S)) * lr_mul
    scale = style @ (params["scale_w"] * w_scale).T + params["scale_b"] * lr_mul
    bias = style @ (params["bias_w"] * w_scale).T + params["bias_b"] * lr_mul
    return x * (1.0 * scale) + bias


if __name__ == "__main__":
    key = jax.random.PRNGKey(0)

    # Case 1: aligned shapes, multiple row tiles (exercises pipelining + megacore).
    B, N, styledim, outch = 2, 512, 32, 128
    kx, ks, kp, key = jax.random.split(key, 4)
    x = jax.random.normal(kx, (B, N, outch), jnp.float32)
    style = jax.random.normal(ks, (B, N, styledim), jnp.float32)
    params = init_params(kp, styledim, outch)
    fused = prepare_genmod_params(params)          # one-time, load-time fusion
    out = jax.block_until_ready(generator_modulation(x, style, fused))
    ref = _reference(x, style, params)
    assert out.shape == (B, N, outch)
    assert jnp.allclose(out, ref, atol=1e-4, rtol=1e-4), "case1 mismatch"

    # Case 2: ragged shapes (M not a tile multiple, C not a lane multiple).
    # No host-side padding / slicing — boundary blocks + masked stores in-kernel.
    B2, N2, styledim2, outch2 = 2, 200, 32, 96
    kx2, ks2, kp2, key = jax.random.split(key, 4)
    x2 = jax.random.normal(kx2, (B2, N2, outch2), jnp.float32)
    style2 = jax.random.normal(ks2, (B2, N2, styledim2), jnp.float32)
    params2 = init_params(kp2, styledim2, outch2)
    fused2 = prepare_genmod_params(params2)
    out2 = jax.block_until_ready(generator_modulation(x2, style2, fused2))
    ref2 = _reference(x2, style2, params2)
    assert out2.shape == (B2, N2, outch2)
    assert jnp.allclose(out2, ref2, atol=1e-4, rtol=1e-4), "case2 mismatch"

    # Case 3: bf16 streaming I/O (halves HBM traffic); math stays f32 inside.
    x3 = x.astype(jnp.bfloat16)
    style3 = style.astype(jnp.bfloat16)
    out3 = jax.block_until_ready(generator_modulation(x3, style3, fused))
    ref3 = _reference(x3.astype(jnp.float32), style3.astype(jnp.float32), params)
    assert out3.dtype == jnp.bfloat16
    assert jnp.allclose(out3.astype(jnp.float32), ref3, atol=5e-2, rtol=5e-2), \
        "case3 mismatch"

    print("KERNEL_OK")
</pallas_src>

<mosaic_0001>
module attributes {stable_mosaic.version = 11 : i64} {
  func.func @_genmod_kernel(%arg0: i32, %arg1: memref<512x128xf32, #tpu.memory_space<vmem>>, %arg2: memref<512x32xf32, #tpu.memory_space<vmem>>, %arg3: memref<32x256xf32, #tpu.memory_space<vmem>>, %arg4: memref<1x256xf32, #tpu.memory_space<vmem>>, %arg5: memref<512x128xf32, #tpu.memory_space<vmem>>) attributes {dimension_semantics = [#tpu.dimension_semantics<parallel>], iteration_bounds = array<i64: 2>, scalar_prefetch = 0 : i64, scratch_operands = 0 : i64, tpu.core_type = #tpu.core_type<tc>, window_params = [{transform_indices = @transform_0, window_bounds = array<i64: 512, 128>}, {transform_indices = @transform_1, window_bounds = array<i64: 512, 32>}, {pipeline_mode = #tpu.pipeline_mode<synchronous>, transform_indices = @transform_2, window_bounds = array<i64: 32, 256>}, {pipeline_mode = #tpu.pipeline_mode<synchronous>, transform_indices = @transform_3, window_bounds = array<i64: 1, 256>}, {transform_indices = @transform_4, window_bounds = array<i64: 512, 128>}]} {
    %c0 = arith.constant 0 : index
    %c0_0 = arith.constant 0 : index
    %0 = vector.load %arg2[%c0, %c0_0] : memref<512x32xf32, #tpu.memory_space<vmem>>, vector<512x32xf32>
    %c0_1 = arith.constant 0 : index
    %c0_2 = arith.constant 0 : index
    %1 = vector.load %arg3[%c0_1, %c0_2] : memref<32x256xf32, #tpu.memory_space<vmem>>, vector<32x256xf32>
    %cst = arith.constant dense<0.000000e+00> : vector<512x256xf32>
    %2 = tpu.matmul %0, %1, %cst {dimension_numbers = #tpu.dot_dimension_numbers<[1], [0], [0], [1], [0, 0, 1, 1], [], []>} : vector<512x32xf32>, vector<32x256xf32>, vector<512x256xf32> -> vector<512x256xf32>
    %c0_3 = arith.constant 0 : index
    %c0_4 = arith.constant 0 : index
    %3 = vector.load %arg4[%c0_3, %c0_4] : memref<1x256xf32, #tpu.memory_space<vmem>>, vector<1x256xf32>
    %4 = vector.broadcast %3 : vector<1x256xf32> to vector<512x256xf32>
    %5 = arith.addf %2, %4 : vector<512x256xf32>
    %6 = vector.extract_strided_slice %5 {offsets = [0, 0], sizes = [512, 128], strides = [1, 1]} : vector<512x256xf32> to vector<512x128xf32>
    %7 = vector.extract_strided_slice %5 {offsets = [0, 128], sizes = [512, 128], strides = [1, 1]} : vector<512x256xf32> to vector<512x128xf32>
    %c0_5 = arith.constant 0 : index
    %c0_6 = arith.constant 0 : index
    %8 = vector.load %arg1[%c0_5, %c0_6] : memref<512x128xf32, #tpu.memory_space<vmem>>, vector<512x128xf32>
    %9 = arith.mulf %8, %6 : vector<512x128xf32>
    %10 = arith.addf %9, %7 : vector<512x128xf32>
    %c0_7 = arith.constant 0 : index
    %c0_8 = arith.constant 0 : index
    %11 = vector.load %arg5[%c0_7, %c0_8] : memref<512x128xf32, #tpu.memory_space<vmem>>, vector<512x128xf32>
    tpu.vector_store %arg5[%c0_7, %c0_8], %10 {strides = array<i32>} : memref<512x128xf32, #tpu.memory_space<vmem>>, vector<512x128xf32>,
    return
  }
  func.func @transform_0(%arg0: i32) -> (i32, i32) {
    %c0_i32 = arith.constant 0 : i32
    %c0_i32_0 = arith.constant 0 : i32
    return %arg0, %c0_i32 : i32, i32
  }
  func.func @transform_1(%arg0: i32) -> (i32, i32) {
    %c0_i32 = arith.constant 0 : i32
    %c0_i32_0 = arith.constant 0 : i32
    return %arg0, %c0_i32 : i32, i32
  }
  func.func @transform_2(%arg0: i32) -> (i32, i32) {
    %c0_i32 = arith.constant 0 : i32
    %c0_i32_0 = arith.constant 0 : i32
    %c0_i32_1 = arith.constant 0 : i32
    return %c0_i32, %c0_i32_0 : i32, i32
  }
  func.func @transform_3(%arg0: i32) -> (i32, i32) {
    %c0_i32 = arith.constant 0 : i32
    %c0_i32_0 = arith.constant 0 : i32
    %c0_i32_1 = arith.constant 0 : i32
    return %c0_i32, %c0_i32_0 : i32, i32
  }
  func.func @transform_4(%arg0: i32) -> (i32, i32) {
    %c0_i32 = arith.constant 0 : i32
    %c0_i32_0 = arith.constant 0 : i32
    return %arg0, %c0_i32 : i32, i32
  }
}

</mosaic_0001>

<llo_original>
// kernel: tpu_custom_call.1
$region0: #{tpu_custom_call.1}
  #allocation0 [shape = 'u32[]', space=smem, size = 0x4, offset = 0x4, fixed_abs, tag = 'smem constant byte address 0x4 - core index']
  #allocation1 [shape = 'u32[144,128]{1,0:T(1,128)}', space=vmem, size = 0x12000, scoped, tag = 'internal scratch']
  %s0 = inlined_call_operand.vmem [shape: f32[1024,128], index: 0, kind: input, shape index: {}]
  %s1 = inlined_call_operand.vmem [shape: f32[1024,32], index: 1, kind: input, shape index: {}]
  %s2 = inlined_call_operand.vmem [shape: f32[32,256], index: 2, kind: input, shape index: {}]
  %s3 = inlined_call_operand.vmem [shape: f32[1,256], index: 3, kind: input, shape index: {}]
  %s4 = inlined_call_operand.hbm [shape: f32[1024,128], index: 4, kind: output, shape index: {}]
  %s5 = sld [smem:[#allocation0]]
  $region49: #{tpu_custom_call.1} parent=0
    _
  %s7 = ssub.s32 1, %s5
  %s8 = scalar_select 0, %s7, %s5
  $region1: #{tpu_custom_call.1} parent=0
    #allocation2 [shape = 'u8[524288]{0}', space=vmem, size = 0x80000, scoped, tag = 'output window, operand 0']
    #allocation3 [shape = 's32[2]{0}', space=sflag, size = 0x8, scoped, tag = 'scoped memory for tpu_custom_call.1']
    %9 = vsyncpa [#allocation3], 0
    %s10 = scalar_lea.sflag [#allocation3], 1
    %11 = vsyncpa %s10, 0
    loop: start=0, step=1, limit=4
    $region2: #{tpu_custom_call.1} parent=1 // loop_pre_header
      _
    $region3: #{tpu_custom_call.1} parent=1 // loop_header
      %s13 = sphi 0, %s17
      %p14 = scmp.ge.s32.totalorder %s13, 4
      %s23 = sphi 0, %s25
      %s26 = sphi 0, %s23
      %s27 = sphi 0, %s26
      %s43 = sphi 0, %s27
      %s49 = sphi 0, %s51
      %s52 = sphi 0, %s49
      %s53 = sphi 0, %s52
      %s69 = sphi 0, %s53
      %s73 = sphi 0, %s73
      %s75 = sphi 0, %s73
      %s76 = sphi 0, %s75
      %s90 = sphi 0, %s76
      %s94 = sphi 0, %s94
      %s96 = sphi 0, %s94
      %s97 = sphi 0, %s96
      %s111 = sphi 0, %s97
      %s117 = sphi 0, %s119
      %s120 = sphi 0, %s117
      %s121 = sphi 0, %s120
      %s137 = sphi 0, %s121
    $region4: #{tpu_custom_call.1} parent=1 // loop_header_branch
      %16 = sbr.rel (%p14) target = $region8
    $region5: #{tpu_custom_call.1} parent=1 // loop_body
      %s18 = ssub.s32 %s13, 1
      %s19 = ssub.s32 %s13, 2
      %s20 = sadd.s32 %s13, 1
      %s21 = ssub.s32 %s13, %s20
      %p22 = scmp.eq.s32.totalorder %s21, 0
      %s24 = sadd.s32 %s23, 1
      %s25 = scalar_select %p22, %s23, %s24
      %p28 = pneg %p22
      %p29 = scmp.eq.s32.totalorder %s13, 1
      %p30 = por %p28, %p29
      %p31 = scmp.ne.s32.totalorder %s23, %s26
      %p32 = scmp.eq.s32.totalorder %s13, 0
      %p33 = por %p31, %p32
      %p34 = scmp.ne.s32.totalorder %s23, %s26
      %p35 = scmp.eq.s32.totalorder %s18, 1
      %p36 = por %p34, %p35
      %p37 = scmp.ne.s32.totalorder %s26, %s27
      %p38 = scmp.eq.s32.totalorder %s18, 0
      %p39 = por %p37, %p38
      %p40 = scmp.ne.s32.totalorder %s26, %s27
      %p41 = scmp.eq.s32.totalorder %s19, 1
      %p42 = por %p40, %p41
      %p44 = scmp.ne.s32.totalorder %s27, %s43
      %p45 = scmp.eq.s32.totalorder %s19, 0
      %p46 = por %p44, %p45
      %s47 = ssub.s32 %s13, %s20
      %p48 = scmp.eq.s32.totalorder %s47, 0
      %s50 = sadd.s32 %s49, 1
      %s51 = scalar_select %p48, %s49, %s50
      %p54 = pneg %p48
      %p55 = scmp.eq.s32.totalorder %s13, 1
      %p56 = por %p54, %p55
      %p57 = scmp.ne.s32.totalorder %s49, %s52
      %p58 = scmp.eq.s32.totalorder %s13, 0
      %p59 = por %p57, %p58
      %p60 = scmp.ne.s32.totalorder %s49, %s52
      %p61 = scmp.eq.s32.totalorder %s18, 1
      %p62 = por %p60, %p61
      %p63 = scmp.ne.s32.totalorder %s52, %s53
      %p64 = scmp.eq.s32.totalorder %s18, 0
      %p65 = por %p63, %p64
      %p66 = scmp.ne.s32.totalorder %s52, %s53
      %p67 = scmp.eq.s32.totalorder %s19, 1
      %p68 = por %p66, %p67
      %p70 = scmp.ne.s32.totalorder %s53, %s69
      %p71 = scmp.eq.s32.totalorder %s19, 0
      %p72 = por %p70, %p71
      %s74 = sadd.s32 %s73, 1
      %p77 = scmp.eq.s32.totalorder %s13, 1
      %p78 = scmp.ne.s32.totalorder %s73, %s75
      %p79 = scmp.eq.s32.totalorder %s13, 0
      %p80 = por %p78, %p79
      %p81 = scmp.ne.s32.totalorder %s73, %s75
      %p82 = scmp.eq.s32.totalorder %s18, 1
      %p83 = por %p81, %p82
      %p84 = scmp.ne.s32.totalorder %s75, %s76
      %p85 = scmp.eq.s32.totalorder %s18, 0
      %p86 = por %p84, %p85
      %p87 = scmp.ne.s32.totalorder %s75, %s76
      %p88 = scmp.eq.s32.totalorder %s19, 1
      %p89 = por %p87, %p88
      %p91 = scmp.ne.s32.totalorder %s76, %s90
      %p92 = scmp.eq.s32.totalorder %s19, 0
      %p93 = por %p91, %p92
      %s95 = sadd.s32 %s94, 1
      %p98 = scmp.eq.s32.totalorder %s13, 1
      %p99 = scmp.ne.s32.totalorder %s94, %s96
      %p100 = scmp.eq.s32.totalorder %s13, 0
      %p101 = por %p99, %p100
      %p102 = scmp.ne.s32.totalorder %s94, %s96
      %p103 = scmp.eq.s32.totalorder %s18, 1
      %p104 = por %p102, %p103
      %p105 = scmp.ne.s32.totalorder %s96, %s97
      %p106 = scmp.eq.s32.totalorder %s18, 0
      %p107 = por %p105, %p106
      %p108 = scmp.ne.s32.totalorder %s96, %s97
      %p109 = scmp.eq.s32.totalorder %s19, 1
      %p110 = por %p108, %p109
      %p112 = scmp.ne.s32.totalorder %s97, %s111
      %p113 = scmp.eq.s32.totalorder %s19, 0
      %p114 = por %p112, %p113
      %s115 = ssub.s32 %s13, %s20
      %p116 = scmp.eq.s32.totalorder %s115, 0
      %s118 = sadd.s32 %s117, 1
      %s119 = scalar_select %p116, %s117, %s118
      %p122 = pneg %p116
      %p123 = scmp.eq.s32.totalorder %s13, 1
      %p124 = por %p122, %p123
      %p125 = scmp.ne.s32.totalorder %s117, %s120
      %p126 = scmp.eq.s32.totalorder %s13, 0
      %p127 = por %p125, %p126
      %p128 = scmp.ne.s32.totalorder %s117, %s120
      %p129 = scmp.eq.s32.totalorder %s18, 1
      %p130 = por %p128, %p129
      %p131 = scmp.ne.s32.totalorder %s120, %s121
      %p132 = scmp.eq.s32.totalorder %s18, 0
      %p133 = por %p131, %p132
      %p134 = scmp.ne.s32.totalorder %s120, %s121
      %p135 = scmp.eq.s32.totalorder %s19, 1
      %p136 = por %p134, %p135
      %p138 = scmp.ne.s32.totalorder %s121, %s137
      %p139 = scmp.eq.s32.totalorder %s19, 0
      %p140 = por %p138, %p139
      %p141 = scmp.le.s32.totalorder 1, %s13
      %p142 = scmp.lt.s32.totalorder %s13, 3
      %p143 = pnand %p141, %p142
      %p144 = pneg %p143
      // Predicated region
      $region9: #{tpu_custom_call.1} parent=5 // pred_check
        _
      $region10: #{tpu_custom_call.1} parent=5 // pred_check_branch
        %146 = sbr.rel (%p143) target = $region12
      $region11: #{tpu_custom_call.1} parent=5 // pred_region
        %s147 = ssub.s32 %s13, 1
        // Predicated region
        $region13: #{tpu_custom_call.1} parent=11 // pred_check
          %p148 = pneg %p86
        $region14: #{tpu_custom_call.1} parent=11 // pred_check_branch
          %150 = sbr.rel (%p148) target = $region16
        $region15: #{tpu_custom_call.1} parent=11 // pred_region
          _
        $region16: #{tpu_custom_call.1} parent=11 // pred_fallthru
          _
        // Predicated region
        $region17: #{tpu_custom_call.1} parent=11 // pred_check
          %p151 = pneg %p107
        $region18: #{tpu_custom_call.1} parent=11 // pred_check_branch
          %153 = sbr.rel (%p151) target = $region20
        $region19: #{tpu_custom_call.1} parent=11 // pred_region
          _
        $region20: #{tpu_custom_call.1} parent=11 // pred_fallthru
          _
      $region12: #{tpu_custom_call.1} parent=5 // pred_fallthru
        _
      %p154 = scmp.lt.s32.totalorder %s13, 2
      // Predicated region
      $region21: #{tpu_custom_call.1} parent=5 // pred_check
        %p155 = pneg %p154
      $region22: #{tpu_custom_call.1} parent=5 // pred_check_branch
        %157 = sbr.rel (%p155) target = $region24
      $region23: #{tpu_custom_call.1} parent=5 // pred_region
        // Predicated region
        $region25: #{tpu_custom_call.1} parent=23 // pred_check
          %p158 = pneg %p33
        $region26: #{tpu_custom_call.1} parent=23 // pred_check_branch
          %160 = sbr.rel (%p158) target = $region28
        $region27: #{tpu_custom_call.1} parent=23 // pred_region
          %s161 = smul.u32 64, %s13
          %p162 = scmp.lt.s32.totalorder %s161, 127
          %s163 = scalar_select %p162, %s161, 127
          %s164 = smul.addr %s163, 8
          %s165 = scalar_lea.vmem %s0, %s164
          %s166 = smul.u32 64, %s13
        $region28: #{tpu_custom_call.1} parent=23 // pred_fallthru
          _
        // Predicated region
        $region29: #{tpu_custom_call.1} parent=23 // pred_check
          %p167 = pneg %p59
        $region30: #{tpu_custom_call.1} parent=23 // pred_check_branch
          %169 = sbr.rel (%p167) target = $region32
        $region31: #{tpu_custom_call.1} parent=23 // pred_region
          %s170 = smul.u32 64, %s13
          %p171 = scmp.lt.s32.totalorder %s170, 127
          %s172 = scalar_select %p171, %s170, 127
          %s173 = smul.addr %s172, 8
          %s174 = scalar_lea.vmem %s1, %s173
          %s175 = smul.u32 64, %s13
        $region32: #{tpu_custom_call.1} parent=23 // pred_fallthru
          _
      $region24: #{tpu_custom_call.1} parent=5 // pred_fallthru
        _
      %p176 = scmp.le.s32.totalorder 1, %s13
      %p177 = scmp.lt.s32.totalorder %s13, 3
      %p178 = pnand %p176, %p177
      %p179 = pneg %p178
      // Predicated region
      $region33: #{tpu_custom_call.1} parent=5 // pred_check
        _
      $region34: #{tpu_custom_call.1} parent=5 // pred_check_branch
        %181 = sbr.rel (%p178) target = $region36
      $region35: #{tpu_custom_call.1} parent=5 // pred_region
        %s182 = ssub.s32 %s13, 1
        %s183 = smul.u32 64, %s18
        %p184 = scmp.lt.s32.totalorder %s183, 127
        %s185 = scalar_select %p184, %s183, 127
        %s186 = smul.addr %s185, 8
        %s187 = scalar_lea.vmem %s0, %s186
        %p188 = pneg %p39
        %p189 = pneg %p36
        %s190 = smul.u32 64, %s18
        %p191 = scmp.lt.s32.totalorder %s190, 127
        %s192 = scalar_select %p191, %s190, 127
        %s193 = smul.addr %s192, 8
        %s194 = scalar_lea.vmem %s1, %s193
        %p195 = pneg %p65
        %p196 = pneg %p62
        %p197 = pneg %p86
        %p198 = pneg %p83
        %p199 = pneg %p107
        %p200 = pneg %p104
        %p201 = pneg %p133
        %p202 = pneg %p130
        %s203 = sand.u32 %s120, 1
        %s204 = scalar_lea.sflag [#allocation3], %s203
        %s205 = sand.u32 %s120, 1
        %s206 = smul.addr %s205, 512
        %s207 = scalar_lea.vmem [#allocation2], %s206
        %s208 = smul.u32 64, %s18
        %p209 = scmp.lt.s32.totalorder %s208, 127
        %s210 = scalar_select %p209, %s208, 127
        %s211 = smul.addr %s210, 8
        %s212 = scalar_lea.vmem %s0, %s211
        %s213 = smul.u32 64, %s18
        %s214 = smul.u32 64, %s18
        %p215 = scmp.lt.s32.totalorder %s214, 127
        %s216 = scalar_select %p215, %s214, 127
        %s217 = smul.addr %s216, 8
        %s218 = scalar_lea.vmem %s1, %s217
        %s219 = smul.u32 64, %s18
        %s220 = smul.u32 64, %s18
        %v221 = vld [vmem:[%s218] sm:$0xff]
        %v222 = vld [vmem:[%s218 + $0x8] sm:$0xff]
        %v223 = vld [vmem:[%s218 + $0x10] sm:$0xff]
        %v224 = vld [vmem:[%s218 + $0x18] sm:$0xff]
        %v225 = vld [vmem:[%s218 + $0x20] sm:$0xff]
        %v226 = vld [vmem:[%s218 + $0x28] sm:$0xff]
        %v227 = vld [vmem:[%s218 + $0x30] sm:$0xff]
        %v228 = vld [vmem:[%s218 + $0x38] sm:$0xff]
        %v229 = vld [vmem:[%s218 + $0x40] sm:$0xff]
        %v230 = vld [vmem:[%s218 + $0x48] sm:$0xff]
        %v231 = vld [vmem:[%s218 + $0x50] sm:$0xff]
        %v232 = vld [vmem:[%s218 + $0x58] sm:$0xff]
        %v233 = vld [vmem:[%s218 + $0x60] sm:$0xff]
        %v234 = vld [vmem:[%s218 + $0x68] sm:$0xff]
        %v235 = vld [vmem:[%s218 + $0x70] sm:$0xff]
        %v236 = vld [vmem:[%s218 + $0x78] sm:$0xff]
        %v237 = vld [vmem:[%s218 + $0x80] sm:$0xff]
        %v238 = vld [vmem:[%s218 + $0x88] sm:$0xff]
        %v239 = vld [vmem:[%s218 + $0x90] sm:$0xff]
        %v240 = vld [vmem:[%s218 + $0x98] sm:$0xff]
        %v241 = vld [vmem:[%s218 + $0xa0] sm:$0xff]
        %v242 = vld [vmem:[%s218 + $0xa8] sm:$0xff]
        %v243 = vld [vmem:[%s218 + $0xb0] sm:$0xff]
        %v244 = vld [vmem:[%s218 + $0xb8] sm:$0xff]
        %v245 = vld [vmem:[%s218 + $0xc0] sm:$0xff]
        %v246 = vld [vmem:[%s218 + $0xc8] sm:$0xff]
        %v247 = vld [vmem:[%s218 + $0xd0] sm:$0xff]
        %v248 = vld [vmem:[%s218 + $0xd8] sm:$0xff]
        %v249 = vld [vmem:[%s218 + $0xe0] sm:$0xff]
        %v250 = vld [vmem:[%s218 + $0xe8] sm:$0xff]
        %v251 = vld [vmem:[%s218 + $0xf0] sm:$0xff]
        %v252 = vld [vmem:[%s218 + $0xf8] sm:$0xff]
        %v253 = vld [vmem:[%s218 + $0x100] sm:$0xff]
        %v254 = vld [vmem:[%s218 + $0x108] sm:$0xff]
        %v255 = vld [vmem:[%s218 + $0x110] sm:$0xff]
        %v256 = vld [vmem:[%s218 + $0x118] sm:$0xff]
        %v257 = vld [vmem:[%s218 + $0x120] sm:$0xff]
        %v258 = vld [vmem:[%s218 + $0x128] sm:$0xff]
        %v259 = vld [vmem:[%s218 + $0x130] sm:$0xff]
        %v260 = vld [vmem:[%s218 + $0x138] sm:$0xff]
        %v261 = vld [vmem:[%s218 + $0x140] sm:$0xff]
        %v262 = vld [vmem:[%s218 + $0x148] sm:$0xff]
        %v263 = vld [vmem:[%s218 + $0x150] sm:$0xff]
        %v264 = vld [vmem:[%s218 + $0x158] sm:$0xff]
        %v265 = vld [vmem:[%s218 + $0x160] sm:$0xff]
        %v266 = vld [vmem:[%s218 + $0x168] sm:$0xff]
        %v267 = vld [vmem:[%s218 + $0x170] sm:$0xff]
        %v268 = vld [vmem:[%s218 + $0x178] sm:$0xff]
        %v269 = vld [vmem:[%s218 + $0x180] sm:$0xff]
        %v270 = vld [vmem:[%s218 + $0x188] sm:$0xff]
        %v271 = vld [vmem:[%s218 + $0x190] sm:$0xff]
        %v272 = vld [vmem:[%s218 + $0x198] sm:$0xff]
        %v273 = vld [vmem:[%s218 + $0x1a0] sm:$0xff]
        %v274 = vld [vmem:[%s218 + $0x1a8] sm:$0xff]
        %v275 = vld [vmem:[%s218 + $0x1b0] sm:$0xff]
        %v276 = vld [vmem:[%s218 + $0x1b8] sm:$0xff]
        %v277 = vld [vmem:[%s218 + $0x1c0] sm:$0xff]
        %v278 = vld [vmem:[%s218 + $0x1c8] sm:$0xff]
        %v279 = vld [vmem:[%s218 + $0x1d0] sm:$0xff]
        %v280 = vld [vmem:[%s218 + $0x1d8] sm:$0xff]
        %v281 = vld [vmem:[%s218 + $0x1e0] sm:$0xff]
        %v282 = vld [vmem:[%s218 + $0x1e8] sm:$0xff]
        %v283 = vld [vmem:[%s218 + $0x1f0] sm:$0xff]
        %v284 = vld [vmem:[%s218 + $0x1f8] sm:$0xff]
        %v285 = vld [vmem:[%s2] sm:$0xff]
        %v286 = vld [vmem:[%s2 + $0x8] sm:$0xff]
        %v287 = vld [vmem:[%s2 + $0x10] sm:$0xff]
        %v288 = vld [vmem:[%s2 + $0x18] sm:$0xff]
        %v289 = vld [vmem:[%s2 + $0x20] sm:$0xff]
        %v290 = vld [vmem:[%s2 + $0x28] sm:$0xff]
        %v291 = vld [vmem:[%s2 + $0x30] sm:$0xff]
        %v292 = vld [vmem:[%s2 + $0x38] sm:$0xff]
        %v293 = vld [vmem:[%s3] sm:$0x3]
        %v295 = vlaneseq
        %v296 = vshrl.u32 %v295, 7
        %v297 = vsub.s32 0, %v296
        %v298 = vrot.slane %v293, %v297
        %v299 = vlaneseq
        %v300 = vshrl.u32 %v299, 7
        %v301 = vsub.s32 1, %v300
        %v302 = vrot.slane %v293, %v301
        %vm305 = vcmask 261120
        %v307 = vsel %vm305, %v221, 0
        %v310 = vsel %vm305, %v222, 0
        %v313 = vsel %vm305, %v223, 0
        %v316 = vsel %vm305, %v224, 0
        %v319 = vsel %vm305, %v225, 0
        %v322 = vsel %vm305, %v226, 0
        %v325 = vsel %vm305, %v227, 0
        %v328 = vsel %vm305, %v228, 0
        %v331 = vsel %vm305, %v229, 0
        %v334 = vsel %vm305, %v230, 0
        %v337 = vsel %vm305, %v231, 0
        %v340 = vsel %vm305, %v232, 0
        %v343 = vsel %vm305, %v233, 0
        %v346 = vsel %vm305, %v234, 0
        %v349 = vsel %vm305, %v235, 0
        %v352 = vsel %vm305, %v236, 0
        %v355 = vsel %vm305, %v237, 0
        %v358 = vsel %vm305, %v238, 0
        %v361 = vsel %vm305, %v239, 0
        %v364 = vsel %vm305, %v240, 0
        %v367 = vsel %vm305, %v241, 0
        %v370 = vsel %vm305, %v242, 0
        %v373 = vsel %vm305, %v243, 0
        %v376 = vsel %vm305, %v244, 0
        %v379 = vsel %vm305, %v245, 0
        %v382 = vsel %vm305, %v246, 0
        %v385 = vsel %vm305, %v247, 0
        %v388 = vsel %vm305, %v248, 0
        %v391 = vsel %vm305, %v249, 0
        %v394 = vsel %vm305, %v250, 0
        %v397 = vsel %vm305, %v251, 0
        %v400 = vsel %vm305, %v252, 0
        %v403 = vsel %vm305, %v253, 0
        %v406 = vsel %vm305, %v254, 0
        %v409 = vsel %vm305, %v255, 0
        %v412 = vsel %vm305, %v256, 0
        %v415 = vsel %vm305, %v257, 0
        %v418 = vsel %vm305, %v258, 0
        %v421 = vsel %vm305, %v259, 0
        %v424 = vsel %vm305, %v260, 0
        %v427 = vsel %vm305, %v261, 0
        %v430 = vsel %vm305, %v262, 0
        %v433 = vsel %vm305, %v263, 0
        %v436 = vsel %vm305, %v264, 0
        %v439 = vsel %vm305, %v265, 0
        %v442 = vsel %vm305, %v266, 0
        %v445 = vsel %vm305, %v267, 0
        %v448 = vsel %vm305, %v268, 0
        %v451 = vsel %vm305, %v269, 0
        %v454 = vsel %vm305, %v270, 0
        %v457 = vsel %vm305, %v271, 0
        %v460 = vsel %vm305, %v272, 0
        %v463 = vsel %vm305, %v273, 0
        %v466 = vsel %vm305, %v274, 0
        %v469 = vsel %vm305, %v275, 0
        %v472 = vsel %vm305, %v276, 0
        %v475 = vsel %vm305, %v277, 0
        %v478 = vsel %vm305, %v278, 0
        %v481 = vsel %vm305, %v279, 0
        %v484 = vsel %vm305, %v280, 0
        %v487 = vsel %vm305, %v281, 0
        %v490 = vsel %vm305, %v282, 0
        %v493 = vsel %vm305, %v283, 0
        %v496 = vsel %vm305, %v284, 0
        %498 = vmatprep.subr.mxu0 %v286
        %499 = vmatpush1.msra.mxu0 %v285
        %500 = vmatprep.subr.mxu0 %v288
        %501 = vmatpush1.msra.mxu0 %v287
        %502 = vmatprep.subr.mxu0 %v290
        %503 = vmatpush1.msra.mxu0 %v289
        %504 = vmatprep.subr.mxu0 %v292
        %505 = vmatpush1.msra.mxu0 %v291
        %506 = vmatprep.subr.mxu0 0.0
        %507 = vmatpush1.msra.mxu0 0.0
        %508 = vmatprep.subr.mxu0 0.0
        %509 = vmatpush1.msra.mxu0 0.0
        %510 = vmatprep.subr.mxu0 0.0
        %511 = vmatpush1.msra.mxu0 0.0
        %512 = vmatprep.subr.mxu0 0.0
        %513 = vmatpush1.msra.mxu0 0.0
        %514 = vmatprep.subr.mxu0 0.0
        %515 = vmatpush1.msra.mxu0 0.0
        %516 = vmatprep.subr.mxu0 0.0
        %517 = vmatpush1.msra.mxu0 0.0
        %518 = vmatprep.subr.mxu0 0.0
        %519 = vmatpush1.msra.mxu0 0.0
        %520 = vmatprep.subr.mxu0 0.0
        %521 = vmatpush1.msra.mxu0 0.0
        %522 = vmatprep.subr.mxu0 0.0
        %523 = vmatpush1.msra.mxu0 0.0
        %524 = vmatprep.subr.mxu0 0.0
        %525 = vmatpush1.msra.mxu0 0.0
        %526 = vmatprep.subr.mxu0 0.0
        %527 = vmatpush1.msra.mxu0 0.0
        %528 = vmatprep.subr.mxu0 0.0
        %529 = vmatpush1.msra.mxu0 0.0
        %530 = vmatprep.subr.mxu0 0.0
        %531 = vmatpush1.msra.mxu0 0.0
        %532 = vmatprep.subr.mxu0 0.0
        %533 = vmatpush1.msra.mxu0 0.0
        %534 = vmatprep.subr.mxu0 0.0
        %535 = vmatpush1.msra.mxu0 0.0
        %536 = vmatprep.subr.mxu0 0.0
        %537 = vmatpush1.msra.mxu0 0.0
        %538 = vmatprep.subr.mxu0 0.0
        %539 = vmatpush1.msra.mxu0 0.0
        %540 = vmatprep.subr.mxu0 0.0
        %541 = vmatpush1.msra.mxu0 0.0
        %542 = vmatprep.subr.mxu0 0.0
        %543 = vmatpush1.msra.mxu0 0.0
        %544 = vmatprep.subr.mxu0 0.0
        %545 = vmatpush1.msra.mxu0 0.0
        %546 = vmatprep.subr.mxu0 0.0
        %547 = vmatpush1.msra.mxu0 0.0
        %548 = vmatprep.subr.mxu0 0.0
        %549 = vmatpush1.msra.mxu0 0.0
        %550 = vmatprep.subr.mxu0 0.0
        %551 = vmatpush1.msra.mxu0 0.0
        %552 = vmatprep.subr.mxu0 0.0
        %553 = vmatpush1.msra.mxu0 0.0
        %554 = vmatprep.subr.mxu0 0.0
        %555 = vmatpush1.msra.mxu0 0.0
        %556 = vmatprep.subr.mxu0 0.0
        %557 = vmatpush1.msra.mxu0 0.0
        %558 = vmatprep.subr.mxu0 0.0
        %559 = vmatpush1.msra.mxu0 0.0
        %560 = vmatprep.subr.mxu0 0.0
        %561 = vmatpush1.msra.mxu0 0.0
        %562 = vmatprep.mubr.f32.mxu0 0.0
        %563 = vmatmul.mubr.f32.gmra.mrb[0].mxu0 %v307
        %v564 = vpop.f32.mrb[0].mxu0
        %v565 = vadd.f32 %v298, %v564
        %v566 = vpop.f32.mrb[0].mxu0
        %v567 = vadd.f32 %v302, %v566
        %568 = vmatprep.mubr.f32.mxu0 0.0
        %569 = vmatmul.mubr.f32.gmra.mrb[0].mxu0 %v310
        %v570 = vpop.f32.mrb[0].mxu0
        %v571 = vadd.f32 %v298, %v570
        %v572 = vpop.f32.mrb[0].mxu0
        %v573 = vadd.f32 %v302, %v572
        %574 = vmatprep.mubr.f32.mxu0 0.0
        %575 = vmatmul.mubr.f32.gmra.mrb[0].mxu0 %v313
        %v576 = vpop.f32.mrb[0].mxu0
        %v577 = vadd.f32 %v298, %v576
        %v578 = vpop.f32.mrb[0].mxu0
        %v579 = vadd.f32 %v302, %v578
        %580 = vmatprep.mubr.f32.mxu0 0.0
        %581 = vmatmul.mubr.f32.gmra.mrb[0].mxu0 %v316
        %v582 = vpop.f32.mrb[0].mxu0
        %v583 = vadd.f32 %v298, %v582
        %v584 = vpop.f32.mrb[0].mxu0
        %v585 = vadd.f32 %v302, %v584
        %586 = vmatprep.mubr.f32.mxu0 0.0
        %587 = vmatmul.mubr.f32.gmra.mrb[0].mxu0 %v319
        %v588 = vpop.f32.mrb[0].mxu0
        %v589 = vadd.f32 %v298, %v588
        %v590 = vpop.f32.mrb[0].mxu0
        %v591 = vadd.f32 %v302, %v590
        %592 = vmatprep.mubr.f32.mxu0 0.0
        %593 = vmatmul.mubr.f32.gmra.mrb[0].mxu0 %v322
        %v594 = vpop.f32.mrb[0].mxu0
        %v595 = vadd.f32 %v298, %v594
        %v596 = vpop.f32.mrb[0].mxu0
        %v597 = vadd.f32 %v302, %v596
        %598 = vmatprep.mubr.f32.mxu0 0.0
        %599 = vmatmul.mubr.f32.gmra.mrb[0].mxu0 %v325
        %v600 = vpop.f32.mrb[0].mxu0
        %v601 = vadd.f32 %v298, %v600
        %v602 = vpop.f32.mrb[0].mxu0
        %v603 = vadd.f32 %v302, %v602
        %604 = vmatprep.mubr.f32.mxu0 0.0
        %605 = vmatmul.mubr.f32.gmra.mrb[0].mxu0 %v328
        %v606 = vpop.f32.mrb[0].mxu0
        %v607 = vadd.f32 %v298, %v606
        %v608 = vpop.f32.mrb[0].mxu0
        %v609 = vadd.f32 %v302, %v608
        %610 = vmatprep.mubr.f32.mxu0 0.0
        %611 = vmatmul.mubr.f32.gmra.mrb[0].mxu0 %v331
        %v612 = vpop.f32.mrb[0].mxu0
        %v613 = vadd.f32 %v298, %v612
        %v614 = vpop.f32.mrb[0].mxu0
        %v615 = vadd.f32 %v302, %v614
        %616 = vmatprep.mubr.f32.mxu0 0.0
        %617 = vmatmul.mubr.f32.gmra.mrb[0].mxu0 %v334
        %v618 = vpop.f32.mrb[0].mxu0
        %v619 = vadd.f32 %v298, %v618
        %v620 = vpop.f32.mrb[0].mxu0
        %v621 = vadd.f32 %v302, %v620
        %622 = vmatprep.mubr.f32.mxu0 0.0
        %623 = vmatmul.mubr.f32.gmra.mrb[0].mxu0 %v337
        %v624 = vpop.f32.mrb[0].mxu0
        %v625 = vadd.f32 %v298, %v624
        %v626 = vpop.f32.mrb[0].mxu0
        %v627 = vadd.f32 %v302, %v626
        %628 = vmatprep.mubr.f32.mxu0 0.0
        %629 = vmatmul.mubr.f32.gmra.mrb[0].mxu0 %v340
        %v630 = vpop.f32.mrb[0].mxu0
        %v631 = vadd.f32 %v298, %v630
        %v632 = vpop.f32.mrb[0].mxu0
        %v633 = vadd.f32 %v302, %v632
        %634 = vmatprep.mubr.f32.mxu0 0.0
        %635 = vmatmul.mubr.f32.gmra.mrb[0].mxu0 %v343
        %v636 = vpop.f32.mrb[0].mxu0
        %v637 = vadd.f32 %v298, %v636
        %v638 = vpop.f32.mrb[0].mxu0
        %v639 = vadd.f32 %v302, %v638
        %640 = vmatprep.mubr.f32.mxu0 0.0
        %641 = vmatmul.mubr.f32.gmra.mrb[0].mxu0 %v346
        %v642 = vpop.f32.mrb[0].mxu0
        %v643 = vadd.f32 %v298, %v642
        %v644 = vpop.f32.mrb[0].mxu0
        %v645 = vadd.f32 %v302, %v644
        %646 = vmatprep.mubr.f32.mxu0 0.0
        %647 = vmatmul.mubr.f32.gmra.mrb[0].mxu0 %v349
        %v648 = vpop.f32.mrb[0].mxu0
        %v649 = vadd.f32 %v298, %v648
        %v650 = vpop.f32.mrb[0].mxu0
        %v651 = vadd.f32 %v302, %v650
        %652 = vmatprep.mubr.f32.mxu0 0.0
        %653 = vmatmul.mubr.f32.gmra.mrb[0].mxu0 %v352
        %v654 = vpop.f32.mrb[0].mxu0
        %v655 = vadd.f32 %v298, %v654
        %v656 = vpop.f32.mrb[0].mxu0
        %v657 = vadd.f32 %v302, %v656
        %658 = vmatprep.mubr.f32.mxu0 0.0
        %659 = vmatmul.mubr.f32.gmra.mrb[0].mxu0 %v355
        %v660 = vpop.f32.mrb[0].mxu0
        %v661 = vadd.f32 %v298, %v660
        %v662 = vpop.f32.mrb[0].mxu0
        %v663 = vadd.f32 %v302, %v662
        %664 = vmatprep.mubr.f32.mxu0 0.0
        %665 = vmatmul.mubr.f32.gmra.mrb[0].mxu0 %v358
        %v666 = vpop.f32.mrb[0].mxu0
        %v667 = vadd.f32 %v298, %v666
        %v668 = vpop.f32.mrb[0].mxu0
        %v669 = vadd.f32 %v302, %v668
        %670 = vmatprep.mubr.f32.mxu0 0.0
        %671 = vmatmul.mubr.f32.gmra.mrb[0].mxu0 %v361
        %v672 = vpop.f32.mrb[0].mxu0
        %v673 = vadd.f32 %v298, %v672
        %v674 = vpop.f32.mrb[0].mxu0
        %v675 = vadd.f32 %v302, %v674
        %676 = vmatprep.mubr.f32.mxu0 0.0
        %677 = vmatmul.mubr.f32.gmra.mrb[0].mxu0 %v364
        %v678 = vpop.f32.mrb[0].mxu0
        %v679 = vadd.f32 %v298, %v678
        %v680 = vpop.f32.mrb[0].mxu0
        %v681 = vadd.f32 %v302, %v680
        %682 = vmatprep.mubr.f32.mxu0 0.0
        %683 = vmatmul.mubr.f32.gmra.mrb[0].mxu0 %v367
        %v684 = vpop.f32.mrb[0].mxu0
        %v685 = vadd.f32 %v298, %v684
        %v686 = vpop.f32.mrb[0].mxu0
        %v687 = vadd.f32 %v302, %v686
        %688 = vmatprep.mubr.f32.mxu0 0.0
        %689 = vmatmul.mubr.f32.gmra.mrb[0].mxu0 %v370
        %v690 = vpop.f32.mrb[0].mxu0
        %v691 = vadd.f32 %v298, %v690
        %v692 = vpop.f32.mrb[0].mxu0
        %v693 = vadd.f32 %v302, %v692
        %694 = vmatprep.mubr.f32.mxu0 0.0
        %695 = vmatmul.mubr.f32.gmra.mrb[0].mxu0 %v373
        %v696 = vpop.f32.mrb[0].mxu0
        %v697 = vadd.f32 %v298, %v696
        %v698 = vpop.f32.mrb[0].mxu0
        %v699 = vadd.f32 %v302, %v698
        %700 = vmatprep.mubr.f32.mxu0 0.0
        %701 = vmatmul.mubr.f32.gmra.mrb[0].mxu0 %v376
        %v702 = vpop.f32.mrb[0].mxu0
        %v703 = vadd.f32 %v298, %v702
        %v704 = vpop.f32.mrb[0].mxu0
        %v705 = vadd.f32 %v302, %v704
        %706 = vmatprep.mubr.f32.mxu0 0.0
        %707 = vmatmul.mubr.f32.gmra.mrb[0].mxu0 %v379
        %v708 = vpop.f32.mrb[0].mxu0
        %v709 = vadd.f32 %v298, %v708
        %v710 = vpop.f32.mrb[0].mxu0
        %v711 = vadd.f32 %v302, %v710
        %712 = vmatprep.mubr.f32.mxu0 0.0
        %713 = vmatmul.mubr.f32.gmra.mrb[0].mxu0 %v382
        %v714 = vpop.f32.mrb[0].mxu0
        %v715 = vadd.f32 %v298, %v714
        %v716 = vpop.f32.mrb[0].mxu0
        %v717 = vadd.f32 %v302, %v716
        %718 = vmatprep.mubr.f32.mxu0 0.0
        %719 = vmatmul.mubr.f32.gmra.mrb[0].mxu0 %v385
        %v720 = vpop.f32.mrb[0].mxu0
        %v721 = vadd.f32 %v298, %v720
        %v722 = vpop.f32.mrb[0].mxu0
        %v723 = vadd.f32 %v302, %v722
        %724 = vmatprep.mubr.f32.mxu0 0.0
        %725 = vmatmul.mubr.f32.gmra.mrb[0].mxu0 %v388
        %v726 = vpop.f32.mrb[0].mxu0
        %v727 = vadd.f32 %v298, %v726
        %v728 = vpop.f32.mrb[0].mxu0
        %v729 = vadd.f32 %v302, %v728
        %730 = vmatprep.mubr.f32.mxu0 0.0
        %731 = vmatmul.mubr.f32.gmra.mrb[0].mxu0 %v391
        %v732 = vpop.f32.mrb[0].mxu0
        %v733 = vadd.f32 %v298, %v732
        %v734 = vpop.f32.mrb[0].mxu0
        %v735 = vadd.f32 %v302, %v734
        %736 = vmatprep.mubr.f32.mxu0 0.0
        %737 = vmatmul.mubr.f32.gmra.mrb[0].mxu0 %v394
        %v738 = vpop.f32.mrb[0].mxu0
        %v739 = vadd.f32 %v298, %v738
        %v740 = vpop.f32.mrb[0].mxu0
        %v741 = vadd.f32 %v302, %v740
        %742 = vmatprep.mubr.f32.mxu0 0.0
        %743 = vmatmul.mubr.f32.gmra.mrb[0].mxu0 %v397
        %v744 = vpop.f32.mrb[0].mxu0
        %v745 = vadd.f32 %v298, %v744
        %v746 = vpop.f32.mrb[0].mxu0
        %v747 = vadd.f32 %v302, %v746
        %748 = vmatprep.mubr.f32.mxu0 0.0
        %749 = vmatmul.mubr.f32.gmra.mrb[0].mxu0 %v400
        %v750 = vpop.f32.mrb[0].mxu0
        %v751 = vadd.f32 %v298, %v750
        %v752 = vpop.f32.mrb[0].mxu0
        %v753 = vadd.f32 %v302, %v752
        %754 = vmatprep.mubr.f32.mxu0 0.0
        %755 = vmatmul.mubr.f32.gmra.mrb[0].mxu0 %v403
        %v756 = vpop.f32.mrb[0].mxu0
        %v757 = vadd.f32 %v298, %v756
        %v758 = vpop.f32.mrb[0].mxu0
        %v759 = vadd.f32 %v302, %v758
        %760 = vmatprep.mubr.f32.mxu0 0.0
        %761 = vmatmul.mubr.f32.gmra.mrb[0].mxu0 %v406
        %v762 = vpop.f32.mrb[0].mxu0
        %v763 = vadd.f32 %v298, %v762
        %v764 = vpop.f32.mrb[0].mxu0
        %v765 = vadd.f32 %v302, %v764
        %766 = vmatprep.mubr.f32.mxu0 0.0
        %767 = vmatmul.mubr.f32.gmra.mrb[0].mxu0 %v409
        %v768 = vpop.f32.mrb[0].mxu0
        %v769 = vadd.f32 %v298, %v768
        %v770 = vpop.f32.mrb[0].mxu0
        %v771 = vadd.f32 %v302, %v770
        %772 = vmatprep.mubr.f32.mxu0 0.0
        %773 = vmatmul.mubr.f32.gmra.mrb[0].mxu0 %v412
        %v774 = vpop.f32.mrb[0].mxu0
        %v775 = vadd.f32 %v298, %v774
        %v776 = vpop.f32.mrb[0].mxu0
        %v777 = vadd.f32 %v302, %v776
        %778 = vmatprep.mubr.f32.mxu0 0.0
        %779 = vmatmul.mubr.f32.gmra.mrb[0].mxu0 %v415
        %v780 = vpop.f32.mrb[0].mxu0
        %v781 = vadd.f32 %v298, %v780
        %v782 = vpop.f32.mrb[0].mxu0
        %v783 = vadd.f32 %v302, %v782
        %784 = vmatprep.mubr.f32.mxu0 0.0
        %785 = vmatmul.mubr.f32.gmra.mrb[0].mxu0 %v418
        %v786 = vpop.f32.mrb[0].mxu0
        %v787 = vadd.f32 %v298, %v786
        %v788 = vpop.f32.mrb[0].mxu0
        %v789 = vadd.f32 %v302, %v788
        %790 = vmatprep.mubr.f32.mxu0 0.0
        %791 = vmatmul.mubr.f32.gmra.mrb[0].mxu0 %v421
        %v792 = vpop.f32.mrb[0].mxu0
        %v793 = vadd.f32 %v298, %v792
        %v794 = vpop.f32.mrb[0].mxu0
        %v795 = vadd.f32 %v302, %v794
        %796 = vmatprep.mubr.f32.mxu0 0.0
        %797 = vmatmul.mubr.f32.gmra.mrb[0].mxu0 %v424
        %v798 = vpop.f32.mrb[0].mxu0
        %v799 = vadd.f32 %v298, %v798
        %v800 = vpop.f32.mrb[0].mxu0
        %v801 = vadd.f32 %v302, %v800
        %802 = vmatprep.mubr.f32.mxu0 0.0
        %803 = vmatmul.mubr.f32.gmra.mrb[0].mxu0 %v427
        %v804 = vpop.f32.mrb[0].mxu0
        %v805 = vadd.f32 %v298, %v804
        %v806 = vpop.f32.mrb[0].mxu0
        %v807 = vadd.f32 %v302, %v806
        %808 = vmatprep.mubr.f32.mxu0 0.0
        %809 = vmatmul.mubr.f32.gmra.mrb[0].mxu0 %v430
        %v810 = vpop.f32.mrb[0].mxu0
        %v811 = vadd.f32 %v298, %v810
        %v812 = vpop.f32.mrb[0].mxu0
        %v813 = vadd.f32 %v302, %v812
        %814 = vmatprep.mubr.f32.mxu0 0.0
        %815 = vmatmul.mubr.f32.gmra.mrb[0].mxu0 %v433
        %v816 = vpop.f32.mrb[0].mxu0
        %v817 = vadd.f32 %v298, %v816
        %v818 = vpop.f32.mrb[0].mxu0
        %v819 = vadd.f32 %v302, %v818
        %820 = vmatprep.mubr.f32.mxu0 0.0
        %821 = vmatmul.mubr.f32.gmra.mrb[0].mxu0 %v436
        %v822 = vpop.f32.mrb[0].mxu0
        %v823 = vadd.f32 %v298, %v822
        %v824 = vpop.f32.mrb[0].mxu0
        %v825 = vadd.f32 %v302, %v824
        %826 = vmatprep.mubr.f32.mxu0 0.0
        %827 = vmatmul.mubr.f32.gmra.mrb[0].mxu0 %v439
        %v828 = vpop.f32.mrb[0].mxu0
        %v829 = vadd.f32 %v298, %v828
        %v830 = vpop.f32.mrb[0].mxu0
        %v831 = vadd.f32 %v302, %v830
        %832 = vmatprep.mubr.f32.mxu0 0.0
        %833 = vmatmul.mubr.f32.gmra.mrb[0].mxu0 %v442
        %v834 = vpop.f32.mrb[0].mxu0
        %v835 = vadd.f32 %v298, %v834
        %v836 = vpop.f32.mrb[0].mxu0
        %v837 = vadd.f32 %v302, %v836
        %838 = vmatprep.mubr.f32.mxu0 0.0
        %839 = vmatmul.mubr.f32.gmra.mrb[0].mxu0 %v445
        %v840 = vpop.f32.mrb[0].mxu0
        %v841 = vadd.f32 %v298, %v840
        %v842 = vpop.f32.mrb[0].mxu0
        %v843 = vadd.f32 %v302, %v842
        %844 = vmatprep.mubr.f32.mxu0 0.0
        %845 = vmatmul.mubr.f32.gmra.mrb[0].mxu0 %v448
        %v846 = vpop.f32.mrb[0].mxu0
        %v847 = vadd.f32 %v298, %v846
        %v848 = vpop.f32.mrb[0].mxu0
        %v849 = vadd.f32 %v302, %v848
        %850 = vmatprep.mubr.f32.mxu0 0.0
        %851 = vmatmul.mubr.f32.gmra.mrb[0].mxu0 %v451
        %v852 = vpop.f32.mrb[0].mxu0
        %v853 = vadd.f32 %v298, %v852
        %v854 = vpop.f32.mrb[0].mxu0
        %v855 = vadd.f32 %v302, %v854
        %856 = vmatprep.mubr.f32.mxu0 0.0
        %857 = vmatmul.mubr.f32.gmra.mrb[0].mxu0 %v454
        %v858 = vpop.f32.mrb[0].mxu0
        %v859 = vadd.f32 %v298, %v858
        %v860 = vpop.f32.mrb[0].mxu0
        %v861 = vadd.f32 %v302, %v860
        %862 = vmatprep.mubr.f32.mxu0 0.0
        %863 = vmatmul.mubr.f32.gmra.mrb[0].mxu0 %v457
        %v864 = vpop.f32.mrb[0].mxu0
        %v865 = vadd.f32 %v298, %v864
        %v866 = vpop.f32.mrb[0].mxu0
        %v867 = vadd.f32 %v302, %v866
        %868 = vmatprep.mubr.f32.mxu0 0.0
        %869 = vmatmul.mubr.f32.gmra.mrb[0].mxu0 %v460
        %v870 = vpop.f32.mrb[0].mxu0
        %v871 = vadd.f32 %v298, %v870
        %v872 = vpop.f32.mrb[0].mxu0
        %v873 = vadd.f32 %v302, %v872
        %874 = vmatprep.mubr.f32.mxu0 0.0
        %875 = vmatmul.mubr.f32.gmra.mrb[0].mxu0 %v463
        %v876 = vpop.f32.mrb[0].mxu0
        %v877 = vadd.f32 %v298, %v876
        %v878 = vpop.f32.mrb[0].mxu0
        %v879 = vadd.f32 %v302, %v878
        %880 = vmatprep.mubr.f32.mxu0 0.0
        %881 = vmatmul.mubr.f32.gmra.mrb[0].mxu0 %v466
        %v882 = vpop.f32.mrb[0].mxu0
        %v883 = vadd.f32 %v298, %v882
        %v884 = vpop.f32.mrb[0].mxu0
        %v885 = vadd.f32 %v302, %v884
        %886 = vmatprep.mubr.f32.mxu0 0.0
        %887 = vmatmul.mubr.f32.gmra.mrb[0].mxu0 %v469
        %v888 = vpop.f32.mrb[0].mxu0
        %v889 = vadd.f32 %v298, %v888
        %v890 = vpop.f32.mrb[0].mxu0
        %v891 = vadd.f32 %v302, %v890
        %892 = vmatprep.mubr.f32.mxu0 0.0
        %893 = vmatmul.mubr.f32.gmra.mrb[0].mxu0 %v472
        %v894 = vpop.f32.mrb[0].mxu0
        %v895 = vadd.f32 %v298, %v894
        %v896 = vpop.f32.mrb[0].mxu0
        %v897 = vadd.f32 %v302, %v896
        %898 = vmatprep.mubr.f32.mxu0 0.0
        %899 = vmatmul.mubr.f32.gmra.mrb[0].mxu0 %v475
        %v900 = vpop.f32.mrb[0].mxu0
        %v901 = vadd.f32 %v298, %v900
        %v902 = vpop.f32.mrb[0].mxu0
        %v903 = vadd.f32 %v302, %v902
        %904 = vmatprep.mubr.f32.mxu0 0.0
        %905 = vmatmul.mubr.f32.gmra.mrb[0].mxu0 %v478
        %v906 = vpop.f32.mrb[0].mxu0
        %v907 = vadd.f32 %v298, %v906
        %v908 = vpop.f32.mrb[0].mxu0
        %v909 = vadd.f32 %v302, %v908
        %910 = vmatprep.mubr.f32.mxu0 0.0
        %911 = vmatmul.mubr.f32.gmra.mrb[0].mxu0 %v481
        %v912 = vpop.f32.mrb[0].mxu0
        %v913 = vadd.f32 %v298, %v912
        %v914 = vpop.f32.mrb[0].mxu0
        %v915 = vadd.f32 %v302, %v914
        %916 = vmatprep.mubr.f32.mxu0 0.0
        %917 = vmatmul.mubr.f32.gmra.mrb[0].mxu0 %v484
        %v918 = vpop.f32.mrb[0].mxu0
        %v919 = vadd.f32 %v298, %v918
        %v920 = vpop.f32.mrb[0].mxu0
        %v921 = vadd.f32 %v302, %v920
        %922 = vmatprep.mubr.f32.mxu0 0.0
        %923 = vmatmul.mubr.f32.gmra.mrb[0].mxu0 %v487
        %v924 = vpop.f32.mrb[0].mxu0
        %v925 = vadd.f32 %v298, %v924
        %v926 = vpop.f32.mrb[0].mxu0
        %v927 = vadd.f32 %v302, %v926
        %928 = vmatprep.mubr.f32.mxu0 0.0
        %929 = vmatmul.mubr.f32.gmra.mrb[0].mxu0 %v490
        %v930 = vpop.f32.mrb[0].mxu0
        %v931 = vadd.f32 %v298, %v930
        %v932 = vpop.f32.mrb[0].mxu0
        %v933 = vadd.f32 %v302, %v932
        %934 = vmatprep.mubr.f32.mxu0 0.0
        %935 = vmatmul.mubr.f32.gmra.mrb[0].mxu0 %v493
        %v936 = vpop.f32.mrb[0].mxu0
        %v937 = vadd.f32 %v298, %v936
        %v938 = vpop.f32.mrb[0].mxu0
        %v939 = vadd.f32 %v302, %v938
        %940 = vmatprep.mubr.f32.mxu0 0.0
        %941 = vmatmul.mubr.f32.gmra.mrb[0].mxu0 %v496
        %v942 = vpop.f32.mrb[0].mxu0
        %v943 = vadd.f32 %v298, %v942
        %v944 = vpop.f32.mrb[0].mxu0
        %v945 = vadd.f32 %v302, %v944
        %946 = vdwg.mxu0
        %v947 = vld [vmem:[%s212] sm:$0xff]
        %v948 = vld [vmem:[%s212 + $0x8] sm:$0xff]
        %v949 = vld [vmem:[%s212 + $0x10] sm:$0xff]
        %v950 = vld [vmem:[%s212 + $0x18] sm:$0xff]
        %v951 = vld [vmem:[%s212 + $0x20] sm:$0xff]
        %v952 = vld [vmem:[%s212 + $0x28] sm:$0xff]
        %v953 = vld [vmem:[%s212 + $0x30] sm:$0xff]
        %v954 = vld [vmem:[%s212 + $0x38] sm:$0xff]
        %v955 = vld [vmem:[%s212 + $0x40] sm:$0xff]
        %v956 = vld [vmem:[%s212 + $0x48] sm:$0xff]
        %v957 = vld [vmem:[%s212 + $0x50] sm:$0xff]
        %v958 = vld [vmem:[%s212 + $0x58] sm:$0xff]
        %v959 = vld [vmem:[%s212 + $0x60] sm:$0xff]
        %v960 = vld [vmem:[%s212 + $0x68] sm:$0xff]
        %v961 = vld [vmem:[%s212 + $0x70] sm:$0xff]
        %v962 = vld [vmem:[%s212 + $0x78] sm:$0xff]
        %v963 = vld [vmem:[%s212 + $0x80] sm:$0xff]
        %v964 = vld [vmem:[%s212 + $0x88] sm:$0xff]
        %v965 = vld [vmem:[%s212 + $0x90] sm:$0xff]
        %v966 = vld [vmem:[%s212 + $0x98] sm:$0xff]
        %v967 = vld [vmem:[%s212 + $0xa0] sm:$0xff]
        %v968 = vld [vmem:[%s212 + $0xa8] sm:$0xff]
        %v969 = vld [vmem:[%s212 + $0xb0] sm:$0xff]
        %v970 = vld [vmem:[%s212 + $0xb8] sm:$0xff]
        %v971 = vld [vmem:[%s212 + $0xc0] sm:$0xff]
        %v972 = vld [vmem:[%s212 + $0xc8] sm:$0xff]
        %v973 = vld [vmem:[%s212 + $0xd0] sm:$0xff]
        %v974 = vld [vmem:[%s212 + $0xd8] sm:$0xff]
        %v975 = vld [vmem:[%s212 + $0xe0] sm:$0xff]
        %v976 = vld [vmem:[%s212 + $0xe8] sm:$0xff]
        %v977 = vld [vmem:[%s212 + $0xf0] sm:$0xff]
        %v978 = vld [vmem:[%s212 + $0xf8] sm:$0xff]
        %v979 = vld [vmem:[%s212 + $0x100] sm:$0xff]
        %v980 = vld [vmem:[%s212 + $0x108] sm:$0xff]
        %v981 = vld [vmem:[%s212 + $0x110] sm:$0xff]
        %v982 = vld [vmem:[%s212 + $0x118] sm:$0xff]
        %v983 = vld [vmem:[%s212 + $0x120] sm:$0xff]
        %v984 = vld [vmem:[%s212 + $0x128] sm:$0xff]
        %v985 = vld [vmem:[%s212 + $0x130] sm:$0xff]
        %v986 = vld [vmem:[%s212 + $0x138] sm:$0xff]
        %v987 = vld [vmem:[%s212 + $0x140] sm:$0xff]
        %v988 = vld [vmem:[%s212 + $0x148] sm:$0xff]
        %v989 = vld [vmem:[%s212 + $0x150] sm:$0xff]
        %v990 = vld [vmem:[%s212 + $0x158] sm:$0xff]
        %v991 = vld [vmem:[%s212 + $0x160] sm:$0xff]
        %v992 = vld [vmem:[%s212 + $0x168] sm:$0xff]
        %v993 = vld [vmem:[%s212 + $0x170] sm:$0xff]
        %v994 = vld [vmem:[%s212 + $0x178] sm:$0xff]
        %v995 = vld [vmem:[%s212 + $0x180] sm:$0xff]
        %v996 = vld [vmem:[%s212 + $0x188] sm:$0xff]
        %v997 = vld [vmem:[%s212 + $0x190] sm:$0xff]
        %v998 = vld [vmem:[%s212 + $0x198] sm:$0xff]
        %v999 = vld [vmem:[%s212 + $0x1a0] sm:$0xff]
        %v1000 = vld [vmem:[%s212 + $0x1a8] sm:$0xff]
        %v1001 = vld [vmem:[%s212 + $0x1b0] sm:$0xff]
        %v1002 = vld [vmem:[%s212 + $0x1b8] sm:$0xff]
        %v1003 = vld [vmem:[%s212 + $0x1c0] sm:$0xff]
        %v1004 = vld [vmem:[%s212 + $0x1c8] sm:$0xff]
        %v1005 = vld [vmem:[%s212 + $0x1d0] sm:$0xff]
        %v1006 = vld [vmem:[%s212 + $0x1d8] sm:$0xff]
        %v1007 = vld [vmem:[%s212 + $0x1e0] sm:$0xff]
        %v1008 = vld [vmem:[%s212 + $0x1e8] sm:$0xff]
        %v1009 = vld [vmem:[%s212 + $0x1f0] sm:$0xff]
        %v1010 = vld [vmem:[%s212 + $0x1f8] sm:$0xff]
        %v1011 = vmul.f32 %v947, %v565
        %v1012 = vmul.f32 %v948, %v571
        %v1013 = vmul.f32 %v949, %v577
        %v1014 = vmul.f32 %v950, %v583
        %v1015 = vmul.f32 %v951, %v589
        %v1016 = vmul.f32 %v952, %v595
        %v1017 = vmul.f32 %v953, %v601
        %v1018 = vmul.f32 %v954, %v607
        %v1019 = vmul.f32 %v955, %v613
        %v1020 = vmul.f32 %v956, %v619
        %v1021 = vmul.f32 %v957, %v625
        %v1022 = vmul.f32 %v958, %v631
        %v1023 = vmul.f32 %v959, %v637
        %v1024 = vmul.f32 %v960, %v643
        %v1025 = vmul.f32 %v961, %v649
        %v1026 = vmul.f32 %v962, %v655
        %v1027 = vmul.f32 %v963, %v661
        %v1028 = vmul.f32 %v964, %v667
        %v1029 = vmul.f32 %v965, %v673
        %v1030 = vmul.f32 %v966, %v679
        %v1031 = vmul.f32 %v967, %v685
        %v1032 = vmul.f32 %v968, %v691
        %v1033 = vmul.f32 %v969, %v697
        %v1034 = vmul.f32 %v970, %v703
        %v1035 = vmul.f32 %v971, %v709
        %v1036 = vmul.f32 %v972, %v715
        %v1037 = vmul.f32 %v973, %v721
        %v1038 = vmul.f32 %v974, %v727
        %v1039 = vmul.f32 %v975, %v733
        %v1040 = vmul.f32 %v976, %v739
        %v1041 = vmul.f32 %v977, %v745
        %v1042 = vmul.f32 %v978, %v751
        %v1043 = vmul.f32 %v979, %v757
        %v1044 = vmul.f32 %v980, %v763
        %v1045 = vmul.f32 %v981, %v769
        %v1046 = vmul.f32 %v982, %v775
        %v1047 = vmul.f32 %v983, %v781
        %v1048 = vmul.f32 %v984, %v787
        %v1049 = vmul.f32 %v985, %v793
        %v1050 = vmul.f32 %v986, %v799
        %v1051 = vmul.f32 %v987, %v805
        %v1052 = vmul.f32 %v988, %v811
        %v1053 = vmul.f32 %v989, %v817
        %v1054 = vmul.f32 %v990, %v823
        %v1055 = vmul.f32 %v991, %v829
        %v1056 = vmul.f32 %v992, %v835
        %v1057 = vmul.f32 %v993, %v841
        %v1058 = vmul.f32 %v994, %v847
        %v1059 = vmul.f32 %v995, %v853
        %v1060 = vmul.f32 %v996, %v859
        %v1061 = vmul.f32 %v997, %v865
        %v1062 = vmul.f32 %v998, %v871
        %v1063 = vmul.f32 %v999, %v877
        %v1064 = vmul.f32 %v1000, %v883
        %v1065 = vmul.f32 %v1001, %v889
        %v1066 = vmul.f32 %v1002, %v895
        %v1067 = vmul.f32 %v1003, %v901
        %v1068 = vmul.f32 %v1004, %v907
        %v1069 = vmul.f32 %v1005, %v913
        %v1070 = vmul.f32 %v1006, %v919
        %v1071 = vmul.f32 %v1007, %v925
        %v1072 = vmul.f32 %v1008, %v931
        %v1073 = vmul.f32 %v1009, %v937
        %v1074 = vmul.f32 %v1010, %v943
        %v1075 = vadd.f32 %v1011, %v567
        %v1076 = vadd.f32 %v1012, %v573
        %v1077 = vadd.f32 %v1013, %v579
        %v1078 = vadd.f32 %v1014, %v585
        %v1079 = vadd.f32 %v1015, %v591
        %v1080 = vadd.f32 %v1016, %v597
        %v1081 = vadd.f32 %v1017, %v603
        %v1082 = vadd.f32 %v1018, %v609
        %v1083 = vadd.f32 %v1019, %v615
        %v1084 = vadd.f32 %v1020, %v621
        %v1085 = vadd.f32 %v1021, %v627
        %v1086 = vadd.f32 %v1022, %v633
        %v1087 = vadd.f32 %v1023, %v639
        %v1088 = vadd.f32 %v1024, %v645
        %v1089 = vadd.f32 %v1025, %v651
        %v1090 = vadd.f32 %v1026, %v657
        %v1091 = vadd.f32 %v1027, %v663
        %v1092 = vadd.f32 %v1028, %v669
        %v1093 = vadd.f32 %v1029, %v675
        %v1094 = vadd.f32 %v1030, %v681
        %v1095 = vadd.f32 %v1031, %v687
        %v1096 = vadd.f32 %v1032, %v693
        %v1097 = vadd.f32 %v1033, %v699
        %v1098 = vadd.f32 %v1034, %v705
        %v1099 = vadd.f32 %v1035, %v711
        %v1100 = vadd.f32 %v1036, %v717
        %v1101 = vadd.f32 %v1037, %v723
        %v1102 = vadd.f32 %v1038, %v729
        %v1103 = vadd.f32 %v1039, %v735
        %v1104 = vadd.f32 %v1040, %v741
        %v1105 = vadd.f32 %v1041, %v747
        %v1106 = vadd.f32 %v1042, %v753
        %v1107 = vadd.f32 %v1043, %v759
        %v1108 = vadd.f32 %v1044, %v765
        %v1109 = vadd.f32 %v1045, %v771
        %v1110 = vadd.f32 %v1046, %v777
        %v1111 = vadd.f32 %v1047, %v783
        %v1112 = vadd.f32 %v1048, %v789
        %v1113 = vadd.f32 %v1049, %v795
        %v1114 = vadd.f32 %v1050, %v801
        %v1115 = vadd.f32 %v1051, %v807
        %v1116 = vadd.f32 %v1052, %v813
        %v1117 = vadd.f32 %v1053, %v819
        %v1118 = vadd.f32 %v1054, %v825
        %v1119 = vadd.f32 %v1055, %v831
        %v1120 = vadd.f32 %v1056, %v837
        %v1121 = vadd.f32 %v1057, %v843
        %v1122 = vadd.f32 %v1058, %v849
        %v1123 = vadd.f32 %v1059, %v855
        %v1124 = vadd.f32 %v1060, %v861
        %v1125 = vadd.f32 %v1061, %v867
        %v1126 = vadd.f32 %v1062, %v873
        %v1127 = vadd.f32 %v1063, %v879
        %v1128 = vadd.f32 %v1064, %v885
        %v1129 = vadd.f32 %v1065, %v891
        %v1130 = vadd.f32 %v1066, %v897
        %v1131 = vadd.f32 %v1067, %v903
        %v1132 = vadd.f32 %v1068, %v909
        %v1133 = vadd.f32 %v1069, %v915
        %v1134 = vadd.f32 %v1070, %v921
        %v1135 = vadd.f32 %v1071, %v927
        %v1136 = vadd.f32 %v1072, %v933
        %v1137 = vadd.f32 %v1073, %v939
        %v1138 = vadd.f32 %v1074, %v945
        %1139 = vst [vmem:[%s207] sm:$0xff] %v1075
        %1140 = vst [vmem:[%s207 + $0x8] sm:$0xff] %v1076
        %1141 = vst [vmem:[%s207 + $0x10] sm:$0xff] %v1077
        %1142 = vst [vmem:[%s207 + $0x18] sm:$0xff] %v1078
        %1143 = vst [vmem:[%s207 + $0x20] sm:$0xff] %v1079
        %1144 = vst [vmem:[%s207 + $0x28] sm:$0xff] %v1080
        %1145 = vst [vmem:[%s207 + $0x30] sm:$0xff] %v1081
        %1146 = vst [vmem:[%s207 + $0x38] sm:$0xff] %v1082
        %1147 = vst [vmem:[%s207 + $0x40] sm:$0xff] %v1083
        %1148 = vst [vmem:[%s207 + $0x48] sm:$0xff] %v1084
        %1149 = vst [vmem:[%s207 + $0x50] sm:$0xff] %v1085
        %1150 = vst [vmem:[%s207 + $0x58] sm:$0xff] %v1086
        %1151 = vst [vmem:[%s207 + $0x60] sm:$0xff] %v1087
        %1152 = vst [vmem:[%s207 + $0x68] sm:$0xff] %v1088
        %1153 = vst [vmem:[%s207 + $0x70] sm:$0xff] %v1089
        %1154 = vst [vmem:[%s207 + $0x78] sm:$0xff] %v1090
        %1155 = vst [vmem:[%s207 + $0x80] sm:$0xff] %v1091
        %1156 = vst [vmem:[%s207 + $0x88] sm:$0xff] %v1092
        %1157 = vst [vmem:[%s207 + $0x90] sm:$0xff] %v1093
        %1158 = vst [vmem:[%s207 + $0x98] sm:$0xff] %v1094
        %1159 = vst [vmem:[%s207 + $0xa0] sm:$0xff] %v1095
        %1160 = vst [vmem:[%s207 + $0xa8] sm:$0xff] %v1096
        %1161 = vst [vmem:[%s207 + $0xb0] sm:$0xff] %v1097
        %1162 = vst [vmem:[%s207 + $0xb8] sm:$0xff] %v1098
        %1163 = vst [vmem:[%s207 + $0xc0] sm:$0xff] %v1099
        %1164 = vst [vmem:[%s207 + $0xc8] sm:$0xff] %v1100
        %1165 = vst [vmem:[%s207 + $0xd0] sm:$0xff] %v1101
        %1166 = vst [vmem:[%s207 + $0xd8] sm:$0xff] %v1102
        %1167 = vst [vmem:[%s207 + $0xe0] sm:$0xff] %v1103
        %1168 = vst [vmem:[%s207 + $0xe8] sm:$0xff] %v1104
        %1169 = vst [vmem:[%s207 + $0xf0] sm:$0xff] %v1105
        %1170 = vst [vmem:[%s207 + $0xf8] sm:$0xff] %v1106
        %1171 = vst [vmem:[%s207 + $0x100] sm:$0xff] %v1107
        %1172 = vst [vmem:[%s207 + $0x108] sm:$0xff] %v1108
        %1173 = vst [vmem:[%s207 + $0x110] sm:$0xff] %v1109
        %1174 = vst [vmem:[%s207 + $0x118] sm:$0xff] %v1110
        %1175 = vst [vmem:[%s207 + $0x120] sm:$0xff] %v1111
        %1176 = vst [vmem:[%s207 + $0x128] sm:$0xff] %v1112
        %1177 = vst [vmem:[%s207 + $0x130] sm:$0xff] %v1113
        %1178 = vst [vmem:[%s207 + $0x138] sm:$0xff] %v1114
        %1179 = vst [vmem:[%s207 + $0x140] sm:$0xff] %v1115
        %1180 = vst [vmem:[%s207 + $0x148] sm:$0xff] %v1116
        %1181 = vst [vmem:[%s207 + $0x150] sm:$0xff] %v1117
        %1182 = vst [vmem:[%s207 + $0x158] sm:$0xff] %v1118
        %1183 = vst [vmem:[%s207 + $0x160] sm:$0xff] %v1119
        %1184 = vst [vmem:[%s207 + $0x168] sm:$0xff] %v1120
        %1185 = vst [vmem:[%s207 + $0x170] sm:$0xff] %v1121
        %1186 = vst [vmem:[%s207 + $0x178] sm:$0xff] %v1122
        %1187 = vst [vmem:[%s207 + $0x180] sm:$0xff] %v1123
        %1188 = vst [vmem:[%s207 + $0x188] sm:$0xff] %v1124
        %1189 = vst [vmem:[%s207 + $0x190] sm:$0xff] %v1125
        %1190 = vst [vmem:[%s207 + $0x198] sm:$0xff] %v1126
        %1191 = vst [vmem:[%s207 + $0x1a0] sm:$0xff] %v1127
        %1192 = vst [vmem:[%s207 + $0x1a8] sm:$0xff] %v1128
        %1193 = vst [vmem:[%s207 + $0x1b0] sm:$0xff] %v1129
        %1194 = vst [vmem:[%s207 + $0x1b8] sm:$0xff] %v1130
        %1195 = vst [vmem:[%s207 + $0x1c0] sm:$0xff] %v1131
        %1196 = vst [vmem:[%s207 + $0x1c8] sm:$0xff] %v1132
        %1197 = vst [vmem:[%s207 + $0x1d0] sm:$0xff] %v1133
        %1198 = vst [vmem:[%s207 + $0x1d8] sm:$0xff] %v1134
        %1199 = vst [vmem:[%s207 + $0x1e0] sm:$0xff] %v1135
        %1200 = vst [vmem:[%s207 + $0x1e8] sm:$0xff] %v1136
        %1201 = vst [vmem:[%s207 + $0x1f0] sm:$0xff] %v1137
        %1202 = vst [vmem:[%s207 + $0x1f8] sm:$0xff] %v1138
        %s1203 = sand.u32 %s120, 1
        %s1204 = scalar_lea.sflag [#allocation3], %s1203
        %s1205 = sand.u32 %s120, 1
        %s1206 = smul.addr %s1205, 512
        %s1207 = scalar_lea.vmem [#allocation2], %s1206
        // Predicated region
        $region37: #{tpu_custom_call.1} parent=35 // pred_check
          %p1208 = pneg %p130
        $region38: #{tpu_custom_call.1} parent=35 // pred_check_branch
          %1210 = sbr.rel (%p1208) target = $region40
        $region39: #{tpu_custom_call.1} parent=35 // pred_region
          %s1211 = smul.u32 64, %s18
          %s1213 = ssub.s32 8192, 8192
          %1214 = vsyncadd %s1204, %s1213
          %s1215 = smul.addr %s1211, 128
          %s1216 = scalar_lea.hbm %s4, %s1215
          %s1217 = sshll.u32 %s1207, 4
          %s1218 = int_to_ptr.vmem [resolvable:$true] %s1217
          %1223 = dma.vmem_to_hbm [thread:$0]  %s1218, 8192, %s1216, %s1204, 128, 128, 8
        $region40: #{tpu_custom_call.1} parent=35 // pred_fallthru
          _
      $region36: #{tpu_custom_call.1} parent=5 // pred_fallthru
        _
      %p1224 = scmp.le.s32.totalorder 2, %s13
      // Predicated region
      $region41: #{tpu_custom_call.1} parent=5 // pred_check
        %p1225 = pneg %p1224
      $region42: #{tpu_custom_call.1} parent=5 // pred_check_branch
        %1227 = sbr.rel (%p1225) target = $region44
      $region43: #{tpu_custom_call.1} parent=5 // pred_region
        %s1228 = ssub.s32 %s13, 2
        // Predicated region
        $region45: #{tpu_custom_call.1} parent=43 // pred_check
          %p1229 = pneg %p136
        $region46: #{tpu_custom_call.1} parent=43 // pred_check_branch
          %1231 = sbr.rel (%p1229) target = $region48
        $region47: #{tpu_custom_call.1} parent=43 // pred_region
          %s1232 = sand.u32 %s121, 1
          %s1233 = scalar_lea.sflag [#allocation3], %s1232
          %s1234 = sand.u32 %s121, 1
          %s1235 = smul.addr %s1234, 512
          %s1236 = scalar_lea.vmem [#allocation2], %s1235
          %1237 = dma.done %s1233, 8192
        $region48: #{tpu_custom_call.1} parent=43 // pred_fallthru
          _
      $region44: #{tpu_custom_call.1} parent=5 // pred_fallthru
        _
    $region6: #{tpu_custom_call.1} parent=1 // loop_footer
      %s17 = sadd.s32 1, %s13
    $region7: #{tpu_custom_call.1} parent=1 // loop_footer_branch
      %12 = sbr.rel target = $region3
    $region8: #{tpu_custom_call.1} parent=1 // loop_exit
      _
    %1238 = vsyncpa [#allocation3], 1
    %s1239 = scalar_lea.sflag [#allocation3], 1
    %1240 = vsyncpa %s1239, 1

</llo_original>
